<compile_context>
chip_gen: v6e
topology: v6e:2x2x1
jax: 0.10.0
libtpu: 0.0.40
codegen_flags: <defaults>
</compile_context>

<pallas_src>
import functools

import jax
import jax.numpy as jnp
from jax.experimental import pallas as pl
from jax.experimental.pallas import tpu as pltpu

_IN_FEATURES = 19
_HIDDEN = 128
_OUT_FEATURES = 7
_K_PAD = 32      # 19 -> 32  (sublane aligned; zero padded, no effect on result)
_OUT_PAD = 128   # 7  -> 128 (lane-dense output stores; sliced off outside)


# ----------------------------------------------------------------------------
# Pallas kernel: fused fc1 + ReLU + fc2 for one batch tile
# ----------------------------------------------------------------------------
def _smlp_kernel(x_ref, w1_ref, b1_ref, w2_ref, b2_ref, o_ref):
    x = x_ref[...].astype(jnp.bfloat16)
    h = jnp.dot(x, w1_ref[...], preferred_element_type=jnp.float32)
    h = jnp.maximum(h + b1_ref[...], 0.0)                       # bias + ReLU in f32
    out = jnp.dot(h.astype(jnp.bfloat16), w2_ref[...],
                  preferred_element_type=jnp.float32)
    o_ref[...] = out + b2_ref[...]


# ----------------------------------------------------------------------------
# One-time parameter packing (hoisted out of the hot path)
# ----------------------------------------------------------------------------
def pack_smlp_params(w1, b1, w2, b2):
    """PyTorch layout -> kernel layout.

    w1: (128, 19)  b1: (128,)  w2: (7, 128)  b2: (7,)
    Returns zero-padded, transposed bf16 weight matrices and f32 row biases.
    """
    w1 = jnp.asarray(w1, jnp.float32)
    w2 = jnp.asarray(w2, jnp.float32)
    w1t = jnp.zeros((_K_PAD, _HIDDEN), jnp.bfloat16)
    w1t = w1t.at[:_IN_FEATURES, :].set(w1.T.astype(jnp.bfloat16))
    b1p = jnp.asarray(b1, jnp.float32).reshape(1, _HIDDEN)
    w2t = jnp.zeros((_HIDDEN, _OUT_PAD), jnp.bfloat16)
    w2t = w2t.at[:, :_OUT_FEATURES].set(w2.T.astype(jnp.bfloat16))
    b2p = jnp.zeros((1, _OUT_PAD), jnp.float32)
    b2p = b2p.at[0, :_OUT_FEATURES].set(jnp.asarray(b2, jnp.float32))
    return {"w1t": w1t, "b1": b1p, "w2t": w2t, "b2": b2p}


# ----------------------------------------------------------------------------
# Forward
# ----------------------------------------------------------------------------
@jax.jit
def smlp_forward(params, x):
    """SMLP.forward: x.flatten(1) -> fc1 -> ReLU -> fc2."""
    x2 = jnp.asarray(x, jnp.float32).reshape(x.shape[0], -1)    # x.flatten(1)
    n = x2.shape[0]

    # batch tile: multiple of 8 sublanes, capped at 128 rows per grid step
    tm = min(128, pl.cdiv(n, 8) * 8)
    n_pad = pl.cdiv(n, tm) * tm

    xp = jnp.zeros((n_pad, _K_PAD), jnp.float32)
    xp = xp.at[:n, :_IN_FEATURES].set(x2)

    out = pl.pallas_call(
        _smlp_kernel,
        out_shape=jax.ShapeDtypeStruct((n_pad, _OUT_PAD), jnp.float32),
        grid_spec=pltpu.PrefetchScalarGridSpec(
            num_scalar_prefetch=0,
            grid=(n_pad // tm,),
            in_specs=[
                pl.BlockSpec((tm, _K_PAD), lambda i: (i, 0)),          # x tile
                pl.BlockSpec((_K_PAD, _HIDDEN), lambda i: (0, 0)),     # W1^T (resident)
                pl.BlockSpec((1, _HIDDEN), lambda i: (0, 0)),          # b1
                pl.BlockSpec((_HIDDEN, _OUT_PAD), lambda i: (0, 0)),   # W2^T (resident)
                pl.BlockSpec((1, _OUT_PAD), lambda i: (0, 0)),         # b2
            ],
            out_specs=pl.BlockSpec((tm, _OUT_PAD), lambda i: (i, 0)),
        ),
        compiler_params=pltpu.CompilerParams(
            dimension_semantics=("parallel",)),   # megacore batch sharding on v7x
    )(xp, params["w1t"], params["b1"], params["w2t"], params["b2"])

    return out[:n, :_OUT_FEATURES]


# TODO(synk): none — every op in SMLP.forward (flatten, 2x Linear, ReLU) is
# expressed inside the single Pallas kernel; only padding/slicing glue is XLA.

if __name__ == "__main__":
    key = jax.random.PRNGKey(0)
    k1, k2, k3, k4, kx = jax.random.split(key, 5)

    # PyTorch nn.Linear default init: U(-1/sqrt(fan_in), 1/sqrt(fan_in))
    bound1 = 1.0 / (_IN_FEATURES ** 0.5)
    w1 = jax.random.uniform(k1, (_HIDDEN, _IN_FEATURES), jnp.float32, -bound1, bound1)
    b1 = jax.random.uniform(k2, (_HIDDEN,), jnp.float32, -bound1, bound1)
    bound2 = 1.0 / (_HIDDEN ** 0.5)
    w2 = jax.random.uniform(k3, (_OUT_FEATURES, _HIDDEN), jnp.float32, -bound2, bound2)
    b2 = jax.random.uniform(k4, (_OUT_FEATURES,), jnp.float32, -bound2, bound2)

    params = pack_smlp_params(w1, b1, w2, b2)

    # small input consistent with the module: batch=2, 19 features
    x = jax.random.normal(kx, (2, _IN_FEATURES), jnp.float32)

    out = jax.block_until_ready(smlp_forward(params, x))
    assert out.shape == (2, _OUT_FEATURES), out.shape

    # pure-JAX f32 reference (bf16 MXU operands -> loose tolerance)
    ref = jnp.maximum(x @ w1.T + b1, 0.0) @ w2.T + b2
    assert bool(jnp.isfinite(out).all())
    assert bool(jnp.allclose(out, ref, atol=5e-2, rtol=5e-2))

    print("KERNEL_OK")
</pallas_src>

<mosaic_0001>
module attributes {stable_mosaic.version = 11 : i64} {
  func.func @_smlp_kernel(%arg0: i32, %arg1: memref<8x32xf32, #tpu.memory_space<vmem>>, %arg2: memref<32x128xbf16, #tpu.memory_space<vmem>>, %arg3: memref<1x128xf32, #tpu.memory_space<vmem>>, %arg4: memref<128x128xbf16, #tpu.memory_space<vmem>>, %arg5: memref<1x128xf32, #tpu.memory_space<vmem>>, %arg6: memref<8x128xf32, #tpu.memory_space<vmem>>) attributes {dimension_semantics = [#tpu.dimension_semantics<parallel>], iteration_bounds = array<i64: 1>, scalar_prefetch = 0 : i64, scratch_operands = 0 : i64, tpu.core_type = #tpu.core_type<tc>, window_params = [{transform_indices = @transform_0, window_bounds = array<i64: 8, 32>}, {pipeline_mode = #tpu.pipeline_mode<synchronous>, transform_indices = @transform_1, window_bounds = array<i64: 32, 128>}, {pipeline_mode = #tpu.pipeline_mode<synchronous>, transform_indices = @transform_2, window_bounds = array<i64: 1, 128>}, {pipeline_mode = #tpu.pipeline_mode<synchronous>, transform_indices = @transform_3, window_bounds = array<i64: 128, 128>}, {pipeline_mode = #tpu.pipeline_mode<synchronous>, transform_indices = @transform_4, window_bounds = array<i64: 1, 128>}, {transform_indices = @transform_5, window_bounds = array<i64: 8, 128>}]} {
    %c0 = arith.constant 0 : index
    %c0_0 = arith.constant 0 : index
    %0 = vector.load %arg1[%c0, %c0_0] : memref<8x32xf32, #tpu.memory_space<vmem>>, vector<8x32xf32>
    %1 = arith.truncf %0 : vector<8x32xf32> to vector<8x32xbf16>
    %c0_1 = arith.constant 0 : index
    %c0_2 = arith.constant 0 : index
    %2 = vector.load %arg2[%c0_1, %c0_2] : memref<32x128xbf16, #tpu.memory_space<vmem>>, vector<32x128xbf16>
    %cst = arith.constant dense<0.000000e+00> : vector<8x128xf32>
    %3 = tpu.matmul %1, %2, %cst {dimension_numbers = #tpu.dot_dimension_numbers<[1], [0], [0], [1], [0, 0, 1, 1], [], []>} : vector<8x32xbf16>, vector<32x128xbf16>, vector<8x128xf32> -> vector<8x128xf32>
    %c0_3 = arith.constant 0 : index
    %c0_4 = arith.constant 0 : index
    %4 = vector.load %arg3[%c0_3, %c0_4] : memref<1x128xf32, #tpu.memory_space<vmem>>, vector<1x128xf32>
    %5 = vector.broadcast %4 : vector<1x128xf32> to vector<8x128xf32>
    %6 = arith.addf %3, %5 : vector<8x128xf32>
    %cst_5 = arith.constant 0.000000e+00 : f32
    %7 = vector.broadcast %cst_5 : f32 to vector<8x128xf32>
    %8 = arith.maximumf %6, %7 : vector<8x128xf32>
    %9 = arith.truncf %8 : vector<8x128xf32> to vector<8x128xbf16>
    %c0_6 = arith.constant 0 : index
    %c0_7 = arith.constant 0 : index
    %10 = vector.load %arg4[%c0_6, %c0_7] : memref<128x128xbf16, #tpu.memory_space<vmem>>, vector<128x128xbf16>
    %cst_8 = arith.constant dense<0.000000e+00> : vector<8x128xf32>
    %11 = tpu.matmul %9, %10, %cst_8 {dimension_numbers = #tpu.dot_dimension_numbers<[1], [0], [0], [1], [0, 0, 1, 1], [], []>} : vector<8x128xbf16>, vector<128x128xbf16>, vector<8x128xf32> -> vector<8x128xf32>
    %c0_9 = arith.constant 0 : index
    %c0_10 = arith.constant 0 : index
    %12 = vector.load %arg5[%c0_9, %c0_10] : memref<1x128xf32, #tpu.memory_space<vmem>>, vector<1x128xf32>
    %13 = vector.broadcast %12 : vector<1x128xf32> to vector<8x128xf32>
    %14 = arith.addf %11, %13 : vector<8x128xf32>
    %c0_11 = arith.constant 0 : index
    %c0_12 = arith.constant 0 : index
    %15 = vector.load %arg6[%c0_11, %c0_12] : memref<8x128xf32, #tpu.memory_space<vmem>>, vector<8x128xf32>
    tpu.vector_store %arg6[%c0_11, %c0_12], %14 {strides = array<i32>} : memref<8x128xf32, #tpu.memory_space<vmem>>, vector<8x128xf32>,
    return
  }
  func.func @transform_0(%arg0: i32) -> (i32, i32) {
    %c0_i32 = arith.constant 0 : i32
    %c0_i32_0 = arith.constant 0 : i32
    return %arg0, %c0_i32 : i32, i32
  }
  func.func @transform_1(%arg0: i32) -> (i32, i32) {
    %c0_i32 = arith.constant 0 : i32
    %c0_i32_0 = arith.constant 0 : i32
    %c0_i32_1 = arith.constant 0 : i32
    return %c0_i32, %c0_i32_0 : i32, i32
  }
  func.func @transform_2(%arg0: i32) -> (i32, i32) {
    %c0_i32 = arith.constant 0 : i32
    %c0_i32_0 = arith.constant 0 : i32
    %c0_i32_1 = arith.constant 0 : i32
    return %c0_i32, %c0_i32_0 : i32, i32
  }
  func.func @transform_3(%arg0: i32) -> (i32, i32) {
    %c0_i32 = arith.constant 0 : i32
    %c0_i32_0 = arith.constant 0 : i32
    %c0_i32_1 = arith.constant 0 : i32
    return %c0_i32, %c0_i32_0 : i32, i32
  }
  func.func @transform_4(%arg0: i32) -> (i32, i32) {
    %c0_i32 = arith.constant 0 : i32
    %c0_i32_0 = arith.constant 0 : i32
    %c0_i32_1 = arith.constant 0 : i32
    return %c0_i32, %c0_i32_0 : i32, i32
  }
  func.func @transform_5(%arg0: i32) -> (i32, i32) {
    %c0_i32 = arith.constant 0 : i32
    %c0_i32_0 = arith.constant 0 : i32
    return %arg0, %c0_i32 : i32, i32
  }
}

</mosaic_0001>

<llo_original>
// kernel: smlp_forward.1
$region0: #{smlp_forward.1}
  #allocation0 [shape = 'u32[]', space=smem, size = 0x4, offset = 0x4, fixed_abs, tag = 'smem constant byte address 0x4 - core index']
  #allocation1 [shape = 'u32[144,128]{1,0:T(1,128)}', space=vmem, size = 0x12000, scoped, tag = 'internal scratch']
  %s0 = inlined_call_operand.vmem [shape: f32[8,32], index: 0, kind: input, shape index: {}]
  %s1 = inlined_call_operand.hbm [shape: bf16[32,128], index: 1, kind: input, shape index: {}]
  %s2 = inlined_call_operand.vmem [shape: f32[1,128], index: 2, kind: input, shape index: {}]
  %s3 = inlined_call_operand.hbm [shape: bf16[128,128], index: 3, kind: input, shape index: {}]
  %s4 = inlined_call_operand.vmem [shape: f32[1,128], index: 4, kind: input, shape index: {}]
  %s5 = inlined_call_operand.vmem [shape: f32[8,128], index: 5, kind: output, shape index: {}]
  %s6 = sld [smem:[#allocation0]]
  $region38: #{smlp_forward.1} parent=0
    _
  %s8 = ssub.s32 1, %s6
  %s9 = scalar_select 0, %s8, %s6
  $region1: #{smlp_forward.1} parent=0
    #allocation2 [shape = 'u8[8192]{0}', space=vmem, size = 0x2000, scoped, tag = 'input window, operand 1, single buffered']
    #allocation3 [shape = 's32[1]{0}', space=sflag, size = 0x4, scoped, tag = 'scoped memory for smlp_forward.1']
    #allocation4 [shape = 'u8[32768]{0}', space=vmem, size = 0x8000, scoped, tag = 'input window, operand 3, single buffered']
    #allocation5 [shape = 's32[1]{0}', space=sflag, size = 0x4, scoped, tag = 'scoped memory for smlp_forward.1']
    %10 = vsyncpa [#allocation3], 0
    %11 = vsyncpa [#allocation5], 0
    // Predicated region
    $region2: #{smlp_forward.1} parent=1 // pred_check
      _
    $region3: #{smlp_forward.1} parent=1 // pred_check_branch
      %13 = sbr.rel (0) target = $region5
    $region4: #{smlp_forward.1} parent=1 // pred_region
      _
    $region5: #{smlp_forward.1} parent=1 // pred_fallthru
      _
    // Predicated region
    $region6: #{smlp_forward.1} parent=1 // pred_check
      _
    $region7: #{smlp_forward.1} parent=1 // pred_check_branch
      %15 = sbr.rel (0) target = $region9
    $region8: #{smlp_forward.1} parent=1 // pred_region
      %s17 = ssub.s32 256, 256
      %18 = vsyncadd [#allocation3], %s17
      %s19 = sshll.u32 [#allocation2], 4
      %s20 = int_to_ptr.vmem [resolvable:$true] %s19
      %25 = dma.hbm_to_vmem [thread:$0]  %s1, 256, %s20, [#allocation3], 64, 64, 4
    $region9: #{smlp_forward.1} parent=1 // pred_fallthru
      _
    // Predicated region
    $region10: #{smlp_forward.1} parent=1 // pred_check
      _
    $region11: #{smlp_forward.1} parent=1 // pred_check_branch
      %27 = sbr.rel (0) target = $region13
    $region12: #{smlp_forward.1} parent=1 // pred_region
      _
    $region13: #{smlp_forward.1} parent=1 // pred_fallthru
      _
    // Predicated region
    $region14: #{smlp_forward.1} parent=1 // pred_check
      _
    $region15: #{smlp_forward.1} parent=1 // pred_check_branch
      %29 = sbr.rel (0) target = $region17
    $region16: #{smlp_forward.1} parent=1 // pred_region
      %s31 = ssub.s32 1024, 1024
      %32 = vsyncadd [#allocation5], %s31
      %s33 = sshll.u32 [#allocation4], 4
      %s34 = int_to_ptr.vmem [resolvable:$true] %s33
      %39 = dma.hbm_to_vmem [thread:$0]  %s3, 1024, %s34, [#allocation5], 64, 64, 4
    $region17: #{smlp_forward.1} parent=1 // pred_fallthru
      _
    // Predicated region
    $region18: #{smlp_forward.1} parent=1 // pred_check
      _
    $region19: #{smlp_forward.1} parent=1 // pred_check_branch
      %41 = sbr.rel (0) target = $region21
    $region20: #{smlp_forward.1} parent=1 // pred_region
      _
    $region21: #{smlp_forward.1} parent=1 // pred_fallthru
      _
    // Predicated region
    $region22: #{smlp_forward.1} parent=1 // pred_check
      _
    $region23: #{smlp_forward.1} parent=1 // pred_check_branch
      %43 = sbr.rel (0) target = $region25
    $region24: #{smlp_forward.1} parent=1 // pred_region
      %44 = dma.done [#allocation3], 256
    $region25: #{smlp_forward.1} parent=1 // pred_fallthru
      _
    // Predicated region
    $region26: #{smlp_forward.1} parent=1 // pred_check
      _
    $region27: #{smlp_forward.1} parent=1 // pred_check_branch
      %46 = sbr.rel (0) target = $region29
    $region28: #{smlp_forward.1} parent=1 // pred_region
      %47 = dma.done [#allocation5], 1024
    $region29: #{smlp_forward.1} parent=1 // pred_fallthru
      _
    %v49 = vld [vmem:[%s0] sm:$0xff]
    %v50 = vpack.c.bf16 %v49, %v49
    %v51 = vld [vmem:[#allocation2] sm:$0xf]
    %v52 = vld [vmem:[#allocation2 + $0x4] sm:$0xf]
    %v53 = vld [vmem:[#allocation2 + $0x8] sm:$0xf]
    %v54 = vld [vmem:[#allocation2 + $0xc] sm:$0xf]
    %v55 = vld [vmem:[%s2] sm:$0x1]
    %v57 = vlaneseq
    %v58 = vshrl.u32 %v57, 7
    %v59 = vsub.s32 0, %v58
    %v60 = vrot.slane %v55, %v59
    %v66 = vunpack.c.l.b16 %v51
    %v67 = vunpack.c.l.b16 %v52
    %v68 = vunpack.c.l.b16 %v53
    %v69 = vunpack.c.l.b16 %v54
    %v70 = vpack.c.b16 %v67, %v66
    %v71 = vpack.c.b16 %v69, %v68
    %vm74 = vcmask 261120
    %v76 = vsel %vm74, %v50, 0
    %78 = vmatprep.subr.bf16.mxu0 0
    %79 = vmatpush1.bf16.msra.mxu0 0
    %80 = vmatprep.subr.bf16.mxu0 0
    %81 = vmatpush1.bf16.msra.mxu0 0
    %82 = vmatprep.subr.bf16.mxu0 0
    %83 = vmatpush1.bf16.msra.mxu0 0
    %84 = vmatprep.subr.bf16.mxu0 0
    %85 = vmatpush1.bf16.msra.mxu0 0
    %86 = vmatprep.subr.bf16.mxu0 0
    %87 = vmatpush1.bf16.msra.mxu0 0
    %88 = vmatprep.subr.bf16.mxu0 0
    %89 = vmatpush1.bf16.msra.mxu0 0
    %90 = vmatprep.subr.bf16.mxu0 0
    %91 = vmatpush1.bf16.msra.mxu0 %v71
    %92 = vmatprep.subr.bf16.mxu0 0
    %93 = vmatpush1.bf16.msra.mxu0 %v70
    %94 = vmatprep.subr.bf16.mxu0 0
    %95 = vmatpush2.bf16.msra.mxu0 0
    %96 = vmatprep.subr.bf16.mxu0 0
    %97 = vmatpush2.bf16.msra.mxu0 0
    %98 = vmatprep.subr.bf16.mxu0 0
    %99 = vmatpush2.bf16.msra.mxu0 0
    %100 = vmatprep.subr.bf16.mxu0 0
    %101 = vmatpush2.bf16.msra.mxu0 0
    %102 = vmatprep.subr.bf16.mxu0 0
    %103 = vmatpush2.bf16.msra.mxu0 0
    %104 = vmatprep.subr.bf16.mxu0 0
    %105 = vmatpush2.bf16.msra.mxu0 0
    %106 = vmatprep.subr.bf16.mxu0 0
    %107 = vmatpush2.bf16.msra.mxu0 0
    %108 = vmatprep.subr.bf16.mxu0 0
    %109 = vmatpush2.bf16.msra.mxu0 0
    %110 = vmatprep.mubr.bf16.mxu0 0
    %111 = vmatmul.mubr.bf16.gmra.mxu0 %v76
    %v112 = vpop.f32.mrf.mxu0
    %v113 = vadd.f32 %v60, %v112
    %v114 = vpop.f32.mrf.mxu0
    %v115 = vpop.f32.mrf.mxu0
    %v116 = vpop.f32.mrf.mxu0
    %117 = vdwg.mxu0
    %v118 = vmax.f32 %v113, 0.0
    %v119 = vpack.c.bf16 %v118, %v118
    %v120 = vld [vmem:[#allocation4] sm:$0xf]
    %v121 = vld [vmem:[#allocation4 + $0x4] sm:$0xf]
    %v122 = vld [vmem:[#allocation4 + $0x8] sm:$0xf]
    %v123 = vld [vmem:[#allocation4 + $0xc] sm:$0xf]
    %v124 = vld [vmem:[#allocation4 + $0x10] sm:$0xf]
    %v125 = vld [vmem:[#allocation4 + $0x14] sm:$0xf]
    %v126 = vld [vmem:[#allocation4 + $0x18] sm:$0xf]
    %v127 = vld [vmem:[#allocation4 + $0x1c] sm:$0xf]
    %v128 = vld [vmem:[#allocation4 + $0x20] sm:$0xf]
    %v129 = vld [vmem:[#allocation4 + $0x24] sm:$0xf]
    %v130 = vld [vmem:[#allocation4 + $0x28] sm:$0xf]
    %v131 = vld [vmem:[#allocation4 + $0x2c] sm:$0xf]
    %v132 = vld [vmem:[#allocation4 + $0x30] sm:$0xf]
    %v133 = vld [vmem:[#allocation4 + $0x34] sm:$0xf]
    %v134 = vld [vmem:[#allocation4 + $0x38] sm:$0xf]
    %v135 = vld [vmem:[#allocation4 + $0x3c] sm:$0xf]
    %v136 = vld [vmem:[%s4] sm:$0x1]
    %v138 = vlaneseq
    %v139 = vshrl.u32 %v138, 7
    %v140 = vsub.s32 0, %v139
    %v141 = vrot.slane %v136, %v140
    %v159 = vunpack.c.l.b16 %v120
    %v160 = vunpack.c.l.b16 %v121
    %v161 = vunpack.c.l.b16 %v122
    %v162 = vunpack.c.l.b16 %v123
    %v163 = vunpack.c.l.b16 %v124
    %v164 = vunpack.c.l.b16 %v125
    %v165 = vunpack.c.l.b16 %v126
    %v166 = vunpack.c.l.b16 %v127
    %v167 = vunpack.c.l.b16 %v128
    %v168 = vunpack.c.l.b16 %v129
    %v169 = vunpack.c.l.b16 %v130
    %v170 = vunpack.c.l.b16 %v131
    %v171 = vunpack.c.l.b16 %v132
    %v172 = vunpack.c.l.b16 %v133
    %v173 = vunpack.c.l.b16 %v134
    %v174 = vunpack.c.l.b16 %v135
    %v175 = vpack.c.b16 %v160, %v159
    %v176 = vpack.c.b16 %v162, %v161
    %v177 = vpack.c.b16 %v164, %v163
    %v178 = vpack.c.b16 %v166, %v165
    %v179 = vpack.c.b16 %v168, %v167
    %v180 = vpack.c.b16 %v170, %v169
    %v181 = vpack.c.b16 %v172, %v171
    %v182 = vpack.c.b16 %v174, %v173
    %191 = vmatprep.subr.bf16.mxu0 0
    %192 = vmatpush1.bf16.msra.mxu0 %v182
    %193 = vmatprep.subr.bf16.mxu0 0
    %194 = vmatpush1.bf16.msra.mxu0 %v181
    %195 = vmatprep.subr.bf16.mxu0 0
    %196 = vmatpush1.bf16.msra.mxu0 %v180
    %197 = vmatprep.subr.bf16.mxu0 0
    %198 = vmatpush1.bf16.msra.mxu0 %v179
    %199 = vmatprep.subr.bf16.mxu0 0
    %200 = vmatpush1.bf16.msra.mxu0 %v178
    %201 = vmatprep.subr.bf16.mxu0 0
    %202 = vmatpush1.bf16.msra.mxu0 %v177
    %203 = vmatprep.subr.bf16.mxu0 0
    %204 = vmatpush1.bf16.msra.mxu0 %v176
    %205 = vmatprep.subr.bf16.mxu0 0
    %206 = vmatpush1.bf16.msra.mxu0 %v175
    %207 = vmatprep.subr.bf16.mxu0 0
    %208 = vmatpush2.bf16.msra.mxu0 0
    %209 = vmatprep.subr.bf16.mxu0 0
    %210 = vmatpush2.bf16.msra.mxu0 0
    %211 = vmatprep.subr.bf16.mxu0 0
    %212 = vmatpush2.bf16.msra.mxu0 0
    %213 = vmatprep.subr.bf16.mxu0 0
    %214 = vmatpush2.bf16.msra.mxu0 0
    %215 = vmatprep.subr.bf16.mxu0 0
    %216 = vmatpush2.bf16.msra.mxu0 0
    %217 = vmatprep.subr.bf16.mxu0 0
    %218 = vmatpush2.bf16.msra.mxu0 0
    %219 = vmatprep.subr.bf16.mxu0 0
    %220 = vmatpush2.bf16.msra.mxu0 0
    %221 = vmatprep.subr.bf16.mxu0 0
    %222 = vmatpush2.bf16.msra.mxu0 0
    %223 = vmatprep.mubr.bf16.mxu0 0
    %224 = vmatmul.mubr.bf16.gmra.mxu0 %v119
    %v225 = vpop.f32.mrf.mxu0
    %v226 = vadd.f32 %v141, %v225
    %v227 = vpop.f32.mrf.mxu0
    %v228 = vpop.f32.mrf.mxu0
    %v229 = vpop.f32.mrf.mxu0
    %230 = vdwg.mxu0
    %231 = vst [vmem:[%s5] sm:$0xff] %v226
    // Predicated region
    $region30: #{smlp_forward.1} parent=1 // pred_check
      _
    $region31: #{smlp_forward.1} parent=1 // pred_check_branch
      %233 = sbr.rel (0) target = $region33
    $region32: #{smlp_forward.1} parent=1 // pred_region
      _
    $region33: #{smlp_forward.1} parent=1 // pred_fallthru
      _
    // Predicated region
    $region34: #{smlp_forward.1} parent=1 // pred_check
      _
    $region35: #{smlp_forward.1} parent=1 // pred_check_branch
      %235 = sbr.rel (0) target = $region37
    $region36: #{smlp_forward.1} parent=1 // pred_region
      _
    $region37: #{smlp_forward.1} parent=1 // pred_fallthru
      _
    %236 = vsyncpa [#allocation3], 1
    %237 = vsyncpa [#allocation5], 1

</llo_original>
